<compile_context>
chip_gen: v7x
topology: tpu7x:2x2x1
jax: 0.10.0
libtpu: 0.0.40
codegen_flags: <defaults>
</compile_context>

<pallas_src>
import jax
import jax.numpy as jnp
from jax.experimental import pallas as pl
from jax.experimental.pallas import tpu as pltpu


def _round_up(x: int, m: int) -> int:
    return ((x + m - 1) // m) * m


def deepfm_kernel(dense_ref,    # (num_dense, TB)
                  sparse_ref,   # (F*D, TB)
                  w1_ref,       # (H, num_dense)
                  b1_ref,       # (H, 1)
                  w2_ref,       # (D, H)
                  b2_ref,       # (D, 1)
                  wed_ref,      # (DI+2, D)   rows: wfm_d^T | wov_d^T | ones
                  ws_ref,       # (DI+1, F*D) rows: wfm_s^T | ones
                  bfm_ref,      # (DI, 1)
                  wovdeep_ref,  # (1, DI)
                  tail_ref,     # (1, 2) in SMEM: [w_fm_scalar, b_over]
                  out_ref):     # (1, TB)
    DI = bfm_ref.shape[0]

    x = dense_ref[...]           # (num_dense, TB)
    s = sparse_ref[...]          # (F*D, TB)

    # ---- DenseArch: Linear -> ReLU -> Linear -> ReLU (batch on lanes) ----
    h = jnp.maximum(
        jnp.dot(w1_ref[...], x, preferred_element_type=jnp.float32) + b1_ref[...],
        0.0)                     # (H, TB)
    ed = jnp.maximum(
        jnp.dot(w2_ref[...], h, preferred_element_type=jnp.float32) + b2_ref[...],
        0.0)                     # (D, TB)

    # ---- Fused consumer matmuls (deep partials + over partial + FM sums) ----
    ped = jnp.dot(wed_ref[...], ed, preferred_element_type=jnp.float32)  # (DI+2, TB)
    ps = jnp.dot(ws_ref[...], s, preferred_element_type=jnp.float32)     # (DI+1, TB)

    # DeepFM deep interaction: ReLU(Wfm @ cat([ed, s]) + bfm)
    deep = jnp.maximum(ped[:DI, :] + ps[:DI, :] + bfm_ref[...], 0.0)     # (DI, TB)

    # FactorizationMachine: 0.5 * ((sum x)^2 - sum x^2) over cat([ed, s])
    sum_in = ped[DI + 1:DI + 2, :] + ps[DI:DI + 1, :]                    # (1, TB)
    sum_sq = (jnp.sum(ed * ed, axis=0, keepdims=True)
              + jnp.sum(s * s, axis=0, keepdims=True))                   # (1, TB)
    fm = 0.5 * (sum_in * sum_in - sum_sq)                                # (1, TB)

    # ---- OverArch: Linear(cat([ed, deep, fm])) + Sigmoid ----
    w_fm = tail_ref[0, 0]        # scalar read from SMEM
    b_over = tail_ref[0, 1]
    logit = (jnp.dot(wovdeep_ref[...], deep, preferred_element_type=jnp.float32)
             + ped[DI:DI + 1, :]          # ed @ wov_d (from fused matmul)
             + fm * w_fm + b_over)        # (1, TB)
    out_ref[...] = jax.nn.sigmoid(logit)  # lane-dense store


def simple_deepfm_forward(dense_features, pooled_sparse, params, *, max_tb=512):
    """Fused SimpleDeepFMNN forward pass on TPU via Pallas (batch-on-lanes layout)."""
    B, num_dense = dense_features.shape
    FD = pooled_sparse.shape[1]
    D = params["w2"].shape[1]
    DI = params["wfm"].shape[1]

    # Batch tile on the lane axis: multiple of 128, capped so 2 streams x 2
    # pipeline buffers x TB plus resident weights stay well under v7x's VMEM.
    TB = min(max_tb, _round_up(B, 128))
    B_pad = _round_up(B, TB)
    pad = B_pad - B

    f32 = jnp.float32
    dense_t = jnp.pad(dense_features.astype(f32), ((0, pad), (0, 0))).T   # (num_dense, B_pad)
    sparse_t = jnp.pad(pooled_sparse.astype(f32), ((0, pad), (0, 0))).T   # (FD, B_pad)

    # Weights in (out_features, in_features) layout so each layer is W @ X.
    w1_t = params["w1"].T                      # (H, num_dense)
    b1_c = params["b1"].reshape(-1, 1)         # (H, 1)
    w2_t = params["w2"].T                      # (D, H)
    b2_c = params["b2"].reshape(-1, 1)         # (D, 1)

    wfm = params["wfm"]                        # (D + FD, DI)
    wov = params["wov"]                        # (D + DI + 1, 1)
    # Fused consumer weights: one matmul per input stream.
    wed = jnp.concatenate(
        [wfm[:D, :].T,                         # (DI, D)  deep partial from ed
         wov[:D, :].T,                         # (1, D)   over partial from ed
         jnp.ones((1, D), f32)],               # (1, D)   sum(ed) for FM
        axis=0)                                # (DI+2, D)
    ws = jnp.concatenate(
        [wfm[D:, :].T,                         # (DI, FD) deep partial from sparse
         jnp.ones((1, FD), f32)],              # (1, FD)  sum(sparse) for FM
        axis=0)                                # (DI+1, FD)
    bfm_c = params["bfm"].reshape(-1, 1)       # (DI, 1)
    wov_deep = wov[D:D + DI, :].T              # (1, DI)
    tail = jnp.stack([wov[D + DI, 0], params["bov"][0]]).reshape(1, 2)    # SMEM scalars

    grid = (B_pad // TB,)

    def lane_spec(rows):
        return pl.BlockSpec((rows, TB), lambda i: (0, i))

    def const_spec(arr):
        return pl.BlockSpec(arr.shape, lambda i: (0, 0))

    out = pl.pallas_call(
        deepfm_kernel,
        out_shape=jax.ShapeDtypeStruct((1, B_pad), f32),
        grid=grid,
        in_specs=[
            lane_spec(num_dense),                                 # dense
            lane_spec(FD),                                        # sparse
            const_spec(w1_t), const_spec(b1_c),
            const_spec(w2_t), const_spec(b2_c),
            const_spec(wed), const_spec(ws), const_spec(bfm_c),
            const_spec(wov_deep),
            pl.BlockSpec(memory_space=pltpu.MemorySpace.SMEM),    # tail scalars
        ],
        out_specs=lane_spec(1),
        compiler_params=pltpu.CompilerParams(
            dimension_semantics=("parallel",)),
    )(dense_t, sparse_t, w1_t, b1_c, w2_t, b2_c, wed, ws, bfm_c, wov_deep, tail)

    return out[0, :B].reshape(B, 1)


def reference_forward(dense_features, pooled_sparse, params):
    """Plain-JAX reference reproducing the PyTorch module semantics exactly."""
    h = jax.nn.relu(dense_features @ params["w1"] + params["b1"])
    ed = jax.nn.relu(h @ params["w2"] + params["b2"])
    fm_input = jnp.concatenate([ed, pooled_sparse], axis=1)
    deep = jax.nn.relu(fm_input @ params["wfm"] + params["bfm"])
    s = jnp.sum(fm_input, axis=1, keepdims=True)
    fm = 0.5 * (s * s - jnp.sum(fm_input * fm_input, axis=1, keepdims=True))
    cat = jnp.concatenate([ed, deep, fm], axis=1)
    return jax.nn.sigmoid(cat @ params["wov"] + params["bov"])


if __name__ == "__main__":
    # ---- problem sizes (small, consistent with the module) ----
    B = 8               # batch
    NUM_DENSE = 16      # num_dense_features
    HIDDEN = 32         # hidden_layer_size
    D = 8               # embedding_dim (same for all bags)
    F = 2               # number of sparse features ("f1", "f2")
    DI = 4              # deep_fm_dimension
    NUM_EMB = 100       # rows per embedding table
    IDS_PER_BAG = 3     # lookups per (sample, feature)

    FM_IN = D + F * D           # fm_in_features
    OVER_IN = D + DI + 1        # over_arch input

    key = jax.random.PRNGKey(0)
    ks = jax.random.split(key, 12)

    params = {
        "w1": 0.1 * jax.random.normal(ks[0], (NUM_DENSE, HIDDEN), jnp.float32),
        "b1": 0.1 * jax.random.normal(ks[1], (HIDDEN,), jnp.float32),
        "w2": 0.1 * jax.random.normal(ks[2], (HIDDEN, D), jnp.float32),
        "b2": 0.1 * jax.random.normal(ks[3], (D,), jnp.float32),
        "wfm": 0.1 * jax.random.normal(ks[4], (FM_IN, DI), jnp.float32),
        "bfm": 0.1 * jax.random.normal(ks[5], (DI,), jnp.float32),
        "wov": 0.1 * jax.random.normal(ks[6], (OVER_IN, 1), jnp.float32),
        "bov": 0.1 * jax.random.normal(ks[7], (1,), jnp.float32),
    }

    # dense input
    dense_features = jax.random.normal(ks[8], (B, NUM_DENSE), jnp.float32)

    # SparseArch glue: sum-pooled EmbeddingBag lookups (fixed bag length).
    emb_tables = 0.1 * jax.random.normal(ks[9], (F, NUM_EMB, D), jnp.float32)
    ids = jax.random.randint(ks[10], (F, B, IDS_PER_BAG), 0, NUM_EMB)
    # pooled[f, b] = sum_j table_f[ids[f, b, j]]
    gathered = emb_tables[jnp.arange(F)[:, None, None], ids]     # (F, B, IDS, D)
    pooled = jnp.sum(gathered, axis=2)                           # (F, B, D)
    pooled_sparse = jnp.transpose(pooled, (1, 0, 2)).reshape(B, F * D)   # (B, F*D)

    out = simple_deepfm_forward(dense_features, pooled_sparse, params)
    out = jax.block_until_ready(out)

    ref = reference_forward(dense_features, pooled_sparse, params)
    assert out.shape == (B, 1)
    assert jnp.allclose(out, ref, atol=1e-5, rtol=1e-5), (out, ref)

    print("KERNEL_OK")
</pallas_src>

<mosaic_0001>
module attributes {stable_mosaic.version = 11 : i64} {
  func.func @deepfm_kernel(%arg0: i32, %arg1: memref<16x128xf32, #tpu.memory_space<vmem>>, %arg2: memref<16x128xf32, #tpu.memory_space<vmem>>, %arg3: memref<32x16xf32, #tpu.memory_space<vmem>>, %arg4: memref<32x1xf32, #tpu.memory_space<vmem>>, %arg5: memref<8x32xf32, #tpu.memory_space<vmem>>, %arg6: memref<8x1xf32, #tpu.memory_space<vmem>>, %arg7: memref<6x8xf32, #tpu.memory_space<vmem>>, %arg8: memref<5x16xf32, #tpu.memory_space<vmem>>, %arg9: memref<4x1xf32, #tpu.memory_space<vmem>>, %arg10: memref<1x4xf32, #tpu.memory_space<vmem>>, %arg11: memref<1x2xf32, #tpu.memory_space<smem>>, %arg12: memref<1x128xf32, #tpu.memory_space<vmem>>) attributes {dimension_semantics = [#tpu.dimension_semantics<parallel>], iteration_bounds = array<i64: 1>, scalar_prefetch = 0 : i64, scratch_operands = 0 : i64, tpu.core_type = #tpu.core_type<tc>, window_params = [{transform_indices = @transform_0, window_bounds = array<i64: 16, 128>}, {transform_indices = @transform_1, window_bounds = array<i64: 16, 128>}, {pipeline_mode = #tpu.pipeline_mode<synchronous>, transform_indices = @transform_2, window_bounds = array<i64: 32, 16>}, {pipeline_mode = #tpu.pipeline_mode<synchronous>, transform_indices = @transform_3, window_bounds = array<i64: 32, 1>}, {pipeline_mode = #tpu.pipeline_mode<synchronous>, transform_indices = @transform_4, window_bounds = array<i64: 8, 32>}, {pipeline_mode = #tpu.pipeline_mode<synchronous>, transform_indices = @transform_5, window_bounds = array<i64: 8, 1>}, {pipeline_mode = #tpu.pipeline_mode<synchronous>, transform_indices = @transform_6, window_bounds = array<i64: 6, 8>}, {pipeline_mode = #tpu.pipeline_mode<synchronous>, transform_indices = @transform_7, window_bounds = array<i64: 5, 16>}, {pipeline_mode = #tpu.pipeline_mode<synchronous>, transform_indices = @transform_8, window_bounds = array<i64: 4, 1>}, {pipeline_mode = #tpu.pipeline_mode<synchronous>, transform_indices = @transform_9, window_bounds = array<i64: 1, 4>}, {transform_indices = @transform_10, window_bounds = array<i64: 1, 2>}, {transform_indices = @transform_11, window_bounds = array<i64: 1, 128>}]} {
    %c0 = arith.constant 0 : index
    %c0_0 = arith.constant 0 : index
    %0 = vector.load %arg1[%c0, %c0_0] : memref<16x128xf32, #tpu.memory_space<vmem>>, vector<16x128xf32>
    %c0_1 = arith.constant 0 : index
    %c0_2 = arith.constant 0 : index
    %1 = vector.load %arg2[%c0_1, %c0_2] : memref<16x128xf32, #tpu.memory_space<vmem>>, vector<16x128xf32>
    %c0_3 = arith.constant 0 : index
    %c0_4 = arith.constant 0 : index
    %2 = vector.load %arg3[%c0_3, %c0_4] : memref<32x16xf32, #tpu.memory_space<vmem>>, vector<32x16xf32>
    %cst = arith.constant dense<0.000000e+00> : vector<32x128xf32>
    %3 = tpu.matmul %2, %0, %cst {dimension_numbers = #tpu.dot_dimension_numbers<[1], [0], [0], [1], [0, 0, 1, 1], [], []>} : vector<32x16xf32>, vector<16x128xf32>, vector<32x128xf32> -> vector<32x128xf32>
    %c0_5 = arith.constant 0 : index
    %c0_6 = arith.constant 0 : index
    %4 = vector.load %arg4[%c0_5, %c0_6] : memref<32x1xf32, #tpu.memory_space<vmem>>, vector<32x1xf32>
    %5 = vector.broadcast %4 : vector<32x1xf32> to vector<32x128xf32>
    %6 = arith.addf %3, %5 : vector<32x128xf32>
    %cst_7 = arith.constant 0.000000e+00 : f32
    %7 = vector.broadcast %cst_7 : f32 to vector<32x128xf32>
    %8 = arith.maximumf %6, %7 : vector<32x128xf32>
    %c0_8 = arith.constant 0 : index
    %c0_9 = arith.constant 0 : index
    %9 = vector.load %arg5[%c0_8, %c0_9] : memref<8x32xf32, #tpu.memory_space<vmem>>, vector<8x32xf32>
    %cst_10 = arith.constant dense<0.000000e+00> : vector<8x128xf32>
    %10 = tpu.matmul %9, %8, %cst_10 {dimension_numbers = #tpu.dot_dimension_numbers<[1], [0], [0], [1], [0, 0, 1, 1], [], []>} : vector<8x32xf32>, vector<32x128xf32>, vector<8x128xf32> -> vector<8x128xf32>
    %c0_11 = arith.constant 0 : index
    %c0_12 = arith.constant 0 : index
    %11 = vector.load %arg6[%c0_11, %c0_12] : memref<8x1xf32, #tpu.memory_space<vmem>>, vector<8x1xf32>
    %12 = vector.broadcast %11 : vector<8x1xf32> to vector<8x128xf32>
    %13 = arith.addf %10, %12 : vector<8x128xf32>
    %cst_13 = arith.constant 0.000000e+00 : f32
    %14 = vector.broadcast %cst_13 : f32 to vector<8x128xf32>
    %15 = arith.maximumf %13, %14 : vector<8x128xf32>
    %c0_14 = arith.constant 0 : index
    %c0_15 = arith.constant 0 : index
    %16 = vector.load %arg7[%c0_14, %c0_15] : memref<6x8xf32, #tpu.memory_space<vmem>>, vector<6x8xf32>
    %cst_16 = arith.constant dense<0.000000e+00> : vector<6x128xf32>
    %17 = tpu.matmul %16, %15, %cst_16 {dimension_numbers = #tpu.dot_dimension_numbers<[1], [0], [0], [1], [0, 0, 1, 1], [], []>} : vector<6x8xf32>, vector<8x128xf32>, vector<6x128xf32> -> vector<6x128xf32>
    %c0_17 = arith.constant 0 : index
    %c0_18 = arith.constant 0 : index
    %18 = vector.load %arg8[%c0_17, %c0_18] : memref<5x16xf32, #tpu.memory_space<vmem>>, vector<5x16xf32>
    %cst_19 = arith.constant dense<0.000000e+00> : vector<5x128xf32>
    %19 = tpu.matmul %18, %1, %cst_19 {dimension_numbers = #tpu.dot_dimension_numbers<[1], [0], [0], [1], [0, 0, 1, 1], [], []>} : vector<5x16xf32>, vector<16x128xf32>, vector<5x128xf32> -> vector<5x128xf32>
    %20 = vector.extract_strided_slice %17 {offsets = [0, 0], sizes = [4, 128], strides = [1, 1]} : vector<6x128xf32> to vector<4x128xf32>
    %21 = vector.extract_strided_slice %19 {offsets = [0, 0], sizes = [4, 128], strides = [1, 1]} : vector<5x128xf32> to vector<4x128xf32>
    %22 = arith.addf %20, %21 : vector<4x128xf32>
    %c0_20 = arith.constant 0 : index
    %c0_21 = arith.constant 0 : index
    %23 = vector.load %arg9[%c0_20, %c0_21] : memref<4x1xf32, #tpu.memory_space<vmem>>, vector<4x1xf32>
    %24 = vector.broadcast %23 : vector<4x1xf32> to vector<4x128xf32>
    %25 = arith.addf %22, %24 : vector<4x128xf32>
    %cst_22 = arith.constant 0.000000e+00 : f32
    %26 = vector.broadcast %cst_22 : f32 to vector<4x128xf32>
    %27 = arith.maximumf %25, %26 : vector<4x128xf32>
    %28 = vector.extract_strided_slice %17 {offsets = [5, 0], sizes = [1, 128], strides = [1, 1]} : vector<6x128xf32> to vector<1x128xf32>
    %29 = vector.extract_strided_slice %19 {offsets = [4, 0], sizes = [1, 128], strides = [1, 1]} : vector<5x128xf32> to vector<1x128xf32>
    %30 = arith.addf %28, %29 : vector<1x128xf32>
    %31 = arith.mulf %15, %15 : vector<8x128xf32>
    %cst_23 = arith.constant dense<0.000000e+00> : vector<128xf32>
    %32 = vector.multi_reduction <add>, %31, %cst_23 [0] : vector<8x128xf32> to vector<128xf32>
    %33 = vector.shape_cast %32 : vector<128xf32> to vector<1x128xf32>
    %34 = arith.mulf %1, %1 : vector<16x128xf32>
    %cst_24 = arith.constant dense<0.000000e+00> : vector<128xf32>
    %35 = vector.multi_reduction <add>, %34, %cst_24 [0] : vector<16x128xf32> to vector<128xf32>
    %36 = vector.shape_cast %35 : vector<128xf32> to vector<1x128xf32>
    %37 = arith.addf %33, %36 : vector<1x128xf32>
    %38 = arith.mulf %30, %30 : vector<1x128xf32>
    %39 = arith.subf %38, %37 : vector<1x128xf32>
    %cst_25 = arith.constant 5.000000e-01 : f32
    %40 = vector.broadcast %cst_25 : f32 to vector<1x128xf32>
    %41 = arith.mulf %40, %39 : vector<1x128xf32>
    %c0_26 = arith.constant 0 : index
    %c0_27 = arith.constant 0 : index
    %42 = memref.load %arg11[%c0_26, %c0_27] : memref<1x2xf32, #tpu.memory_space<smem>>
    %c0_28 = arith.constant 0 : index
    %c1 = arith.constant 1 : index
    %43 = memref.load %arg11[%c0_28, %c1] : memref<1x2xf32, #tpu.memory_space<smem>>
    %c0_29 = arith.constant 0 : index
    %c0_30 = arith.constant 0 : index
    %44 = vector.load %arg10[%c0_29, %c0_30] : memref<1x4xf32, #tpu.memory_space<vmem>>, vector<1x4xf32>
    %cst_31 = arith.constant dense<0.000000e+00> : vector<1x128xf32>
    %45 = tpu.matmul %44, %27, %cst_31 {dimension_numbers = #tpu.dot_dimension_numbers<[1], [0], [0], [1], [0, 0, 1, 1], [], []>} : vector<1x4xf32>, vector<4x128xf32>, vector<1x128xf32> -> vector<1x128xf32>
    %46 = vector.extract_strided_slice %17 {offsets = [4, 0], sizes = [1, 128], strides = [1, 1]} : vector<6x128xf32> to vector<1x128xf32>
    %47 = arith.addf %45, %46 : vector<1x128xf32>
    %48 = vector.broadcast %42 : f32 to vector<1x128xf32>
    %49 = arith.mulf %41, %48 : vector<1x128xf32>
    %50 = arith.addf %47, %49 : vector<1x128xf32>
    %51 = vector.broadcast %43 : f32 to vector<1x128xf32>
    %52 = arith.addf %50, %51 : vector<1x128xf32>
    %53 = arith.negf %52 : vector<1x128xf32>
    %54 = math.exp %53 : vector<1x128xf32>
    %cst_32 = arith.constant 1.000000e+00 : f32
    %55 = vector.broadcast %cst_32 : f32 to vector<1x128xf32>
    %56 = arith.addf %55, %54 : vector<1x128xf32>
    %57 = arith.divf %55, %56 : vector<1x128xf32>
    %c0_33 = arith.constant 0 : index
    %c0_34 = arith.constant 0 : index
    %58 = vector.load %arg12[%c0_33, %c0_34] : memref<1x128xf32, #tpu.memory_space<vmem>>, vector<1x128xf32>
    tpu.vector_store %arg12[%c0_33, %c0_34], %57 {strides = array<i32>} : memref<1x128xf32, #tpu.memory_space<vmem>>, vector<1x128xf32>,
    return
  }
  func.func @transform_0(%arg0: i32) -> (i32, i32) {
    %c0_i32 = arith.constant 0 : i32
    %c0_i32_0 = arith.constant 0 : i32
    return %c0_i32, %arg0 : i32, i32
  }
  func.func @transform_1(%arg0: i32) -> (i32, i32) {
    %c0_i32 = arith.constant 0 : i32
    %c0_i32_0 = arith.constant 0 : i32
    return %c0_i32, %arg0 : i32, i32
  }
  func.func @transform_2(%arg0: i32) -> (i32, i32) {
    %c0_i32 = arith.constant 0 : i32
    %c0_i32_0 = arith.constant 0 : i32
    %c0_i32_1 = arith.constant 0 : i32
    return %c0_i32, %c0_i32_0 : i32, i32
  }
  func.func @transform_3(%arg0: i32) -> (i32, i32) {
    %c0_i32 = arith.constant 0 : i32
    %c0_i32_0 = arith.constant 0 : i32
    %c0_i32_1 = arith.constant 0 : i32
    return %c0_i32, %c0_i32_0 : i32, i32
  }
  func.func @transform_4(%arg0: i32) -> (i32, i32) {
    %c0_i32 = arith.constant 0 : i32
    %c0_i32_0 = arith.constant 0 : i32
    %c0_i32_1 = arith.constant 0 : i32
    return %c0_i32, %c0_i32_0 : i32, i32
  }
  func.func @transform_5(%arg0: i32) -> (i32, i32) {
    %c0_i32 = arith.constant 0 : i32
    %c0_i32_0 = arith.constant 0 : i32
    %c0_i32_1 = arith.constant 0 : i32
    return %c0_i32, %c0_i32_0 : i32, i32
  }
  func.func @transform_6(%arg0: i32) -> (i32, i32) {
    %c0_i32 = arith.constant 0 : i32
    %c0_i32_0 = arith.constant 0 : i32
    %c0_i32_1 = arith.constant 0 : i32
    return %c0_i32, %c0_i32_0 : i32, i32
  }
  func.func @transform_7(%arg0: i32) -> (i32, i32) {
    %c0_i32 = arith.constant 0 : i32
    %c0_i32_0 = arith.constant 0 : i32
    %c0_i32_1 = arith.constant 0 : i32
    return %c0_i32, %c0_i32_0 : i32, i32
  }
  func.func @transform_8(%arg0: i32) -> (i32, i32) {
    %c0_i32 = arith.constant 0 : i32
    %c0_i32_0 = arith.constant 0 : i32
    %c0_i32_1 = arith.constant 0 : i32
    return %c0_i32, %c0_i32_0 : i32, i32
  }
  func.func @transform_9(%arg0: i32) -> (i32, i32) {
    %c0_i32 = arith.constant 0 : i32
    %c0_i32_0 = arith.constant 0 : i32
    %c0_i32_1 = arith.constant 0 : i32
    return %c0_i32, %c0_i32_0 : i32, i32
  }
  func.func @transform_10(%arg0: i32) -> (i32, i32) {
    %c0_i32 = arith.constant 0 : i32
    %c0_i32_0 = arith.constant 0 : i32
    %c0_i32_1 = arith.constant 0 : i32
    return %c0_i32, %c0_i32_0 : i32, i32
  }
  func.func @transform_11(%arg0: i32) -> (i32, i32) {
    %c0_i32 = arith.constant 0 : i32
    %c0_i32_0 = arith.constant 0 : i32
    return %c0_i32, %arg0 : i32, i32
  }
}

</mosaic_0001>

<llo_original>
// kernel: tpu_custom_call.1
$region0: #{tpu_custom_call.1}
  #allocation0 [shape = 'u32[]', space=smem, size = 0x4, offset = 0x4, fixed_abs, tag = 'smem constant byte address 0x4 - core index']
  #allocation1 [shape = 'u32[144,128]{1,0:T(1,128)}', space=vmem, size = 0x12000, scoped, tag = 'internal scratch']
  %s0 = inlined_call_operand.vmem [shape: f32[16,128], index: 0, kind: input, shape index: {}]
  %s1 = inlined_call_operand.vmem [shape: f32[16,128], index: 1, kind: input, shape index: {}]
  %s2 = inlined_call_operand.vmem [shape: f32[32,16], index: 2, kind: input, shape index: {}]
  %s3 = inlined_call_operand.vmem [shape: f32[32,1], index: 3, kind: input, shape index: {}]
  %s4 = inlined_call_operand.vmem [shape: f32[8,32], index: 4, kind: input, shape index: {}]
  %s5 = inlined_call_operand.vmem [shape: f32[8,1], index: 5, kind: input, shape index: {}]
  %s6 = inlined_call_operand.vmem [shape: f32[6,8], index: 6, kind: input, shape index: {}]
  %s7 = inlined_call_operand.vmem [shape: f32[5,16], index: 7, kind: input, shape index: {}]
  %s8 = inlined_call_operand.vmem [shape: f32[4,1], index: 8, kind: input, shape index: {}]
  %s9 = inlined_call_operand.vmem [shape: f32[1,4], index: 9, kind: input, shape index: {}]
  %s10 = inlined_call_operand.vmem [shape: f32[1,2], index: 10, kind: input, shape index: {}]
  %s11 = inlined_call_operand.hbm [shape: f32[1,128], index: 11, kind: output, shape index: {}]
  %s12 = sld [smem:[#allocation0]]
  $region58: #{tpu_custom_call.1} parent=0
    _
  %s14 = ssub.s32 1, %s12
  %s15 = scalar_select 0, %s14, %s12
  $region1: #{tpu_custom_call.1} parent=0
    #allocation2 [shape = 'u8[512]{0}', space=smem, size = 0x200, scoped, tag = 'input window, operand 10, single buffered']
    #allocation3 [shape = 's32[1]{0}', space=sflag, size = 0x4, scoped, tag = 'scoped memory for tpu_custom_call.1']
    #allocation4 [shape = 's32[1]{0}', space=sflag, size = 0x4, scoped, tag = 'scoped memory for tpu_custom_call.1']
    #allocation5 [shape = 'u8[512]{0}', space=vmem, size = 0x400, scoped, tag = 'output window, operand 0, single buffered']
    %16 = vsyncpa [#allocation4], 0
    %17 = vsyncpa [#allocation3], 0
    // Predicated region
    $region2: #{tpu_custom_call.1} parent=1 // pred_check
      _
    $region3: #{tpu_custom_call.1} parent=1 // pred_check_branch
      %19 = sbr.rel (0) target = $region5
    $region4: #{tpu_custom_call.1} parent=1 // pred_region
      _
    $region5: #{tpu_custom_call.1} parent=1 // pred_fallthru
      _
    // Predicated region
    $region6: #{tpu_custom_call.1} parent=1 // pred_check
      _
    $region7: #{tpu_custom_call.1} parent=1 // pred_check_branch
      %21 = sbr.rel (0) target = $region9
    $region8: #{tpu_custom_call.1} parent=1 // pred_region
      _
    $region9: #{tpu_custom_call.1} parent=1 // pred_fallthru
      _
    // Predicated region
    $region10: #{tpu_custom_call.1} parent=1 // pred_check
      _
    $region11: #{tpu_custom_call.1} parent=1 // pred_check_branch
      %23 = sbr.rel (0) target = $region13
    $region12: #{tpu_custom_call.1} parent=1 // pred_region
      _
    $region13: #{tpu_custom_call.1} parent=1 // pred_fallthru
      _
    // Predicated region
    $region14: #{tpu_custom_call.1} parent=1 // pred_check
      _
    $region15: #{tpu_custom_call.1} parent=1 // pred_check_branch
      %25 = sbr.rel (0) target = $region17
    $region16: #{tpu_custom_call.1} parent=1 // pred_region
      _
    $region17: #{tpu_custom_call.1} parent=1 // pred_fallthru
      _
    // Predicated region
    $region18: #{tpu_custom_call.1} parent=1 // pred_check
      _
    $region19: #{tpu_custom_call.1} parent=1 // pred_check_branch
      %27 = sbr.rel (0) target = $region21
    $region20: #{tpu_custom_call.1} parent=1 // pred_region
      _
    $region21: #{tpu_custom_call.1} parent=1 // pred_fallthru
      _
    // Predicated region
    $region22: #{tpu_custom_call.1} parent=1 // pred_check
      _
    $region23: #{tpu_custom_call.1} parent=1 // pred_check_branch
      %29 = sbr.rel (0) target = $region25
    $region24: #{tpu_custom_call.1} parent=1 // pred_region
      _
    $region25: #{tpu_custom_call.1} parent=1 // pred_fallthru
      _
    // Predicated region
    $region26: #{tpu_custom_call.1} parent=1 // pred_check
      _
    $region27: #{tpu_custom_call.1} parent=1 // pred_check_branch
      %31 = sbr.rel (0) target = $region29
    $region28: #{tpu_custom_call.1} parent=1 // pred_region
      _
    $region29: #{tpu_custom_call.1} parent=1 // pred_fallthru
      _
    // Predicated region
    $region30: #{tpu_custom_call.1} parent=1 // pred_check
      _
    $region31: #{tpu_custom_call.1} parent=1 // pred_check_branch
      %33 = sbr.rel (0) target = $region33
    $region32: #{tpu_custom_call.1} parent=1 // pred_region
      _
    $region33: #{tpu_custom_call.1} parent=1 // pred_fallthru
      _
    // Predicated region
    $region34: #{tpu_custom_call.1} parent=1 // pred_check
      _
    $region35: #{tpu_custom_call.1} parent=1 // pred_check_branch
      %35 = sbr.rel (0) target = $region37
    $region36: #{tpu_custom_call.1} parent=1 // pred_region
      _
    $region37: #{tpu_custom_call.1} parent=1 // pred_fallthru
      _
    // Predicated region
    $region38: #{tpu_custom_call.1} parent=1 // pred_check
      _
    $region39: #{tpu_custom_call.1} parent=1 // pred_check_branch
      %37 = sbr.rel (0) target = $region41
    $region40: #{tpu_custom_call.1} parent=1 // pred_region
      _
    $region41: #{tpu_custom_call.1} parent=1 // pred_fallthru
      _
    // Predicated region
    $region42: #{tpu_custom_call.1} parent=1 // pred_check
      _
    $region43: #{tpu_custom_call.1} parent=1 // pred_check_branch
      %39 = sbr.rel (0) target = $region45
    $region44: #{tpu_custom_call.1} parent=1 // pred_region
      %s41 = ssub.s32 16, 16
      %42 = vsyncadd [#allocation4], %s41
      %s44 = sshll.u32 %s10, 4
      %s45 = int_to_ptr.vmem [resolvable:$true] %s44
      %47 = dma.vmem_to_smem %s45, 16, [#allocation2], [#allocation4]
    $region45: #{tpu_custom_call.1} parent=1 // pred_fallthru
      _
    // Predicated region
    $region46: #{tpu_custom_call.1} parent=1 // pred_check
      _
    $region47: #{tpu_custom_call.1} parent=1 // pred_check_branch
      %49 = sbr.rel (0) target = $region49
    $region48: #{tpu_custom_call.1} parent=1 // pred_region
      %50 = dma.done [#allocation4], 16
    $region49: #{tpu_custom_call.1} parent=1 // pred_fallthru
      _
    %51 = sfence
    %v52 = vld [vmem:[%s0] sm:$0xff]
    %v53 = vld [vmem:[%s0 + $0x8] sm:$0xff]
    %v54 = vld [vmem:[%s1] sm:$0xff]
    %v55 = vld [vmem:[%s1 + $0x8] sm:$0xff]
    %v56 = vld [vmem:[%s2] sm:$0xff]
    %v57 = vld [vmem:[%s2 + $0x8] sm:$0xff]
    %v58 = vld [vmem:[%s2 + $0x10] sm:$0xff]
    %v59 = vld [vmem:[%s2 + $0x18] sm:$0xff]
    %v60 = vld [vmem:[%s3] sm:$0xff]
    %v61 = vld [vmem:[%s3 + $0x8] sm:$0xff]
    %v62 = vld [vmem:[%s3 + $0x10] sm:$0xff]
    %v63 = vld [vmem:[%s3 + $0x18] sm:$0xff]
    %65 = vset.pattern.permute.xlu0 0
    %66 = vperm.xlu0 %65, %v60
    %v67 = vpop.permute.xlu0 %66
    %70 = vset.pattern.permute.xlu0 0
    %71 = vperm.xlu0 %70, %v61
    %v72 = vpop.permute.xlu0 %71
    %75 = vset.pattern.permute.xlu0 0
    %76 = vperm.xlu0 %75, %v62
    %v77 = vpop.permute.xlu0 %76
    %80 = vset.pattern.permute.xlu0 0
    %81 = vperm.xlu0 %80, %v63
    %v82 = vpop.permute.xlu0 %81
    %vm84 = vcmask 130048
    %v86 = vsel %vm84, %v56, 0
    %v89 = vsel %vm84, %v57, 0
    %v92 = vsel %vm84, %v58, 0
    %v95 = vsel %vm84, %v59, 0
    %97 = vmatprep.subr.mxu0 0.0
    %98 = vmatpush1.msra.mxu0 %v52
    %99 = vmatprep.subr.mxu0 0.0
    %100 = vmatpush1.msra.mxu0 %v53
    %101 = vmatprep.subr.mxu0 0.0
    %102 = vmatpush1.msra.mxu0 0.0
    %103 = vmatprep.subr.mxu0 0.0
    %104 = vmatpush1.msra.mxu0 0.0
    %105 = vmatprep.subr.mxu0 0.0
    %106 = vmatpush1.msra.mxu0 0.0
    %107 = vmatprep.subr.mxu0 0.0
    %108 = vmatpush1.msra.mxu0 0.0
    %109 = vmatprep.subr.mxu0 0.0
    %110 = vmatpush1.msra.mxu0 0.0
    %111 = vmatprep.subr.mxu0 0.0
    %112 = vmatpush1.msra.mxu0 0.0
    %113 = vmatprep.subr.mxu0 0.0
    %114 = vmatpush1.msra.mxu0 0.0
    %115 = vmatprep.subr.mxu0 0.0
    %116 = vmatpush1.msra.mxu0 0.0
    %117 = vmatprep.subr.mxu0 0.0
    %118 = vmatpush1.msra.mxu0 0.0
    %119 = vmatprep.subr.mxu0 0.0
    %120 = vmatpush1.msra.mxu0 0.0
    %121 = vmatprep.subr.mxu0 0.0
    %122 = vmatpush1.msra.mxu0 0.0
    %123 = vmatprep.subr.mxu0 0.0
    %124 = vmatpush1.msra.mxu0 0.0
    %125 = vmatprep.subr.mxu0 0.0
    %126 = vmatpush1.msra.mxu0 0.0
    %127 = vmatprep.subr.mxu0 0.0
    %128 = vmatpush1.msra.mxu0 0.0
    %129 = vmatprep.subr.mxu0 0.0
    %130 = vmatpush1.msra.mxu0 0.0
    %131 = vmatprep.subr.mxu0 0.0
    %132 = vmatpush1.msra.mxu0 0.0
    %133 = vmatprep.subr.mxu0 0.0
    %134 = vmatpush1.msra.mxu0 0.0
    %135 = vmatprep.subr.mxu0 0.0
    %136 = vmatpush1.msra.mxu0 0.0
    %137 = vmatprep.subr.mxu0 0.0
    %138 = vmatpush1.msra.mxu0 0.0
    %139 = vmatprep.subr.mxu0 0.0
    %140 = vmatpush1.msra.mxu0 0.0
    %141 = vmatprep.subr.mxu0 0.0
    %142 = vmatpush1.msra.mxu0 0.0
    %143 = vmatprep.subr.mxu0 0.0
    %144 = vmatpush1.msra.mxu0 0.0
    %145 = vmatprep.subr.mxu0 0.0
    %146 = vmatpush1.msra.mxu0 0.0
    %147 = vmatprep.subr.mxu0 0.0
    %148 = vmatpush1.msra.mxu0 0.0
    %149 = vmatprep.subr.mxu0 0.0
    %150 = vmatpush1.msra.mxu0 0.0
    %151 = vmatprep.subr.mxu0 0.0
    %152 = vmatpush1.msra.mxu0 0.0
    %153 = vmatprep.subr.mxu0 0.0
    %154 = vmatpush1.msra.mxu0 0.0
    %155 = vmatprep.subr.mxu0 0.0
    %156 = vmatpush1.msra.mxu0 0.0
    %157 = vmatprep.subr.mxu0 0.0
    %158 = vmatpush1.msra.mxu0 0.0
    %159 = vmatprep.subr.mxu0 0.0
    %160 = vmatpush1.msra.mxu0 0.0
    %161 = vmatprep.mubr.f32.mxu0 0.0
    %162 = vmatmul.mubr.f32.gmra.mrb[0].mxu0 %v86
    %v163 = vpop.f32.mrb[0].mxu0
    %v164 = vadd.f32 %v67, %v163
    %v165 = vpop.f32.mrb[0].mxu0
    %166 = vmatprep.mubr.f32.mxu0 0.0
    %167 = vmatmul.mubr.f32.gmra.mrb[0].mxu0 %v89
    %v168 = vpop.f32.mrb[0].mxu0
    %v169 = vadd.f32 %v72, %v168
    %v170 = vpop.f32.mrb[0].mxu0
    %171 = vmatprep.mubr.f32.mxu0 0.0
    %172 = vmatmul.mubr.f32.gmra.mrb[0].mxu0 %v92
    %v173 = vpop.f32.mrb[0].mxu0
    %v174 = vadd.f32 %v77, %v173
    %v175 = vpop.f32.mrb[0].mxu0
    %176 = vmatprep.mubr.f32.mxu0 0.0
    %177 = vmatmul.mubr.f32.gmra.mrb[0].mxu0 %v95
    %v178 = vpop.f32.mrb[0].mxu0
    %v179 = vadd.f32 %v82, %v178
    %v180 = vpop.f32.mrb[0].mxu0
    %181 = vdwg.mxu0
    %v182 = vmax.f32 %v164, 0.0
    %v183 = vmax.f32 %v169, 0.0
    %v184 = vmax.f32 %v174, 0.0
    %v185 = vmax.f32 %v179, 0.0
    %v186 = vld [vmem:[%s4] sm:$0xff]
    %v187 = vld [vmem:[%s5] sm:$0xff]
    %189 = vset.pattern.permute.xlu0 0
    %190 = vperm.xlu0 %189, %v187
    %v191 = vpop.permute.xlu0 %190
    %vm193 = vcmask 261120
    %v195 = vsel %vm193, %v186, 0
    %197 = vmatprep.subr.mxu0 0.0
    %198 = vmatpush1.msra.mxu0 %v182
    %199 = vmatprep.subr.mxu0 0.0
    %200 = vmatpush1.msra.mxu0 %v183
    %201 = vmatprep.subr.mxu0 0.0
    %202 = vmatpush1.msra.mxu0 %v184
    %203 = vmatprep.subr.mxu0 0.0
    %204 = vmatpush1.msra.mxu0 %v185
    %205 = vmatprep.subr.mxu0 0.0
    %206 = vmatpush1.msra.mxu0 0.0
    %207 = vmatprep.subr.mxu0 0.0
    %208 = vmatpush1.msra.mxu0 0.0
    %209 = vmatprep.subr.mxu0 0.0
    %210 = vmatpush1.msra.mxu0 0.0
    %211 = vmatprep.subr.mxu0 0.0
    %212 = vmatpush1.msra.mxu0 0.0
    %213 = vmatprep.subr.mxu0 0.0
    %214 = vmatpush1.msra.mxu0 0.0
    %215 = vmatprep.subr.mxu0 0.0
    %216 = vmatpush1.msra.mxu0 0.0
    %217 = vmatprep.subr.mxu0 0.0
    %218 = vmatpush1.msra.mxu0 0.0
    %219 = vmatprep.subr.mxu0 0.0
    %220 = vmatpush1.msra.mxu0 0.0
    %221 = vmatprep.subr.mxu0 0.0
    %222 = vmatpush1.msra.mxu0 0.0
    %223 = vmatprep.subr.mxu0 0.0
    %224 = vmatpush1.msra.mxu0 0.0
    %225 = vmatprep.subr.mxu0 0.0
    %226 = vmatpush1.msra.mxu0 0.0
    %227 = vmatprep.subr.mxu0 0.0
    %228 = vmatpush1.msra.mxu0 0.0
    %229 = vmatprep.subr.mxu0 0.0
    %230 = vmatpush1.msra.mxu0 0.0
    %231 = vmatprep.subr.mxu0 0.0
    %232 = vmatpush1.msra.mxu0 0.0
    %233 = vmatprep.subr.mxu0 0.0
    %234 = vmatpush1.msra.mxu0 0.0
    %235 = vmatprep.subr.mxu0 0.0
    %236 = vmatpush1.msra.mxu0 0.0
    %237 = vmatprep.subr.mxu0 0.0
    %238 = vmatpush1.msra.mxu0 0.0
    %239 = vmatprep.subr.mxu0 0.0
    %240 = vmatpush1.msra.mxu0 0.0
    %241 = vmatprep.subr.mxu0 0.0
    %242 = vmatpush1.msra.mxu0 0.0
    %243 = vmatprep.subr.mxu0 0.0
    %244 = vmatpush1.msra.mxu0 0.0
    %245 = vmatprep.subr.mxu0 0.0
    %246 = vmatpush1.msra.mxu0 0.0
    %247 = vmatprep.subr.mxu0 0.0
    %248 = vmatpush1.msra.mxu0 0.0
    %249 = vmatprep.subr.mxu0 0.0
    %250 = vmatpush1.msra.mxu0 0.0
    %251 = vmatprep.subr.mxu0 0.0
    %252 = vmatpush1.msra.mxu0 0.0
    %253 = vmatprep.subr.mxu0 0.0
    %254 = vmatpush1.msra.mxu0 0.0
    %255 = vmatprep.subr.mxu0 0.0
    %256 = vmatpush1.msra.mxu0 0.0
    %257 = vmatprep.subr.mxu0 0.0
    %258 = vmatpush1.msra.mxu0 0.0
    %259 = vmatprep.subr.mxu0 0.0
    %260 = vmatpush1.msra.mxu0 0.0
    %261 = vmatprep.mubr.f32.mxu0 0.0
    %262 = vmatmul.mubr.f32.gmra.mrb[0].mxu0 %v195
    %v263 = vpop.f32.mrb[0].mxu0
    %v264 = vadd.f32 %v191, %v263
    %v265 = vpop.f32.mrb[0].mxu0
    %266 = vdwg.mxu0
    %v267 = vmax.f32 %v264, 0.0
    %v268 = vld [vmem:[%s6] sm:$0x3f]
    %vm269 = vcmask 64512
    %v271 = vsel %vm269, %v268, 0
    %273 = vmatprep.subr.mxu0 0.0
    %274 = vmatpush1.msra.mxu0 %v267
    %275 = vmatprep.subr.mxu0 0.0
    %276 = vmatpush1.msra.mxu0 0.0
    %277 = vmatprep.subr.mxu0 0.0
    %278 = vmatpush1.msra.mxu0 0.0
    %279 = vmatprep.subr.mxu0 0.0
    %280 = vmatpush1.msra.mxu0 0.0
    %281 = vmatprep.subr.mxu0 0.0
    %282 = vmatpush1.msra.mxu0 0.0
    %283 = vmatprep.subr.mxu0 0.0
    %284 = vmatpush1.msra.mxu0 0.0
    %285 = vmatprep.subr.mxu0 0.0
    %286 = vmatpush1.msra.mxu0 0.0
    %287 = vmatprep.subr.mxu0 0.0
    %288 = vmatpush1.msra.mxu0 0.0
    %289 = vmatprep.subr.mxu0 0.0
    %290 = vmatpush1.msra.mxu0 0.0
    %291 = vmatprep.subr.mxu0 0.0
    %292 = vmatpush1.msra.mxu0 0.0
    %293 = vmatprep.subr.mxu0 0.0
    %294 = vmatpush1.msra.mxu0 0.0
    %295 = vmatprep.subr.mxu0 0.0
    %296 = vmatpush1.msra.mxu0 0.0
    %297 = vmatprep.subr.mxu0 0.0
    %298 = vmatpush1.msra.mxu0 0.0
    %299 = vmatprep.subr.mxu0 0.0
    %300 = vmatpush1.msra.mxu0 0.0
    %301 = vmatprep.subr.mxu0 0.0
    %302 = vmatpush1.msra.mxu0 0.0
    %303 = vmatprep.subr.mxu0 0.0
    %304 = vmatpush1.msra.mxu0 0.0
    %305 = vmatprep.subr.mxu0 0.0
    %306 = vmatpush1.msra.mxu0 0.0
    %307 = vmatprep.subr.mxu0 0.0
    %308 = vmatpush1.msra.mxu0 0.0
    %309 = vmatprep.subr.mxu0 0.0
    %310 = vmatpush1.msra.mxu0 0.0
    %311 = vmatprep.subr.mxu0 0.0
    %312 = vmatpush1.msra.mxu0 0.0
    %313 = vmatprep.subr.mxu0 0.0
    %314 = vmatpush1.msra.mxu0 0.0
    %315 = vmatprep.subr.mxu0 0.0
    %316 = vmatpush1.msra.mxu0 0.0
    %317 = vmatprep.subr.mxu0 0.0
    %318 = vmatpush1.msra.mxu0 0.0
    %319 = vmatprep.subr.mxu0 0.0
    %320 = vmatpush1.msra.mxu0 0.0
    %321 = vmatprep.subr.mxu0 0.0
    %322 = vmatpush1.msra.mxu0 0.0
    %323 = vmatprep.subr.mxu0 0.0
    %324 = vmatpush1.msra.mxu0 0.0
    %325 = vmatprep.subr.mxu0 0.0
    %326 = vmatpush1.msra.mxu0 0.0
    %327 = vmatprep.subr.mxu0 0.0
    %328 = vmatpush1.msra.mxu0 0.0
    %329 = vmatprep.subr.mxu0 0.0
    %330 = vmatpush1.msra.mxu0 0.0
    %331 = vmatprep.subr.mxu0 0.0
    %332 = vmatpush1.msra.mxu0 0.0
    %333 = vmatprep.subr.mxu0 0.0
    %334 = vmatpush1.msra.mxu0 0.0
    %335 = vmatprep.subr.mxu0 0.0
    %336 = vmatpush1.msra.mxu0 0.0
    %337 = vmatprep.mubr.f32.mxu0 0.0
    %338 = vmatmul.mubr.f32.gmra.mrb[0].mxu0 %v271
    %v339 = vpop.f32.mrb[0].mxu0
    %v340 = vadd.f32 0.0, %v339
    %v341 = vpop.f32.mrb[0].mxu0
    %342 = vdwg.mxu0
    %v343 = vld [vmem:[%s7] sm:$0x1f]
    %v345 = vsel %vm84, %v343, 0
    %347 = vmatprep.subr.mxu0 0.0
    %348 = vmatpush1.msra.mxu0 %v54
    %349 = vmatprep.subr.mxu0 0.0
    %350 = vmatpush1.msra.mxu0 %v55
    %351 = vmatprep.subr.mxu0 0.0
    %352 = vmatpush1.msra.mxu0 0.0
    %353 = vmatprep.subr.mxu0 0.0
    %354 = vmatpush1.msra.mxu0 0.0
    %355 = vmatprep.subr.mxu0 0.0
    %356 = vmatpush1.msra.mxu0 0.0
    %357 = vmatprep.subr.mxu0 0.0
    %358 = vmatpush1.msra.mxu0 0.0
    %359 = vmatprep.subr.mxu0 0.0
    %360 = vmatpush1.msra.mxu0 0.0
    %361 = vmatprep.subr.mxu0 0.0
    %362 = vmatpush1.msra.mxu0 0.0
    %363 = vmatprep.subr.mxu0 0.0
    %364 = vmatpush1.msra.mxu0 0.0
    %365 = vmatprep.subr.mxu0 0.0
    %366 = vmatpush1.msra.mxu0 0.0
    %367 = vmatprep.subr.mxu0 0.0
    %368 = vmatpush1.msra.mxu0 0.0
    %369 = vmatprep.subr.mxu0 0.0
    %370 = vmatpush1.msra.mxu0 0.0
    %371 = vmatprep.subr.mxu0 0.0
    %372 = vmatpush1.msra.mxu0 0.0
    %373 = vmatprep.subr.mxu0 0.0
    %374 = vmatpush1.msra.mxu0 0.0
    %375 = vmatprep.subr.mxu0 0.0
    %376 = vmatpush1.msra.mxu0 0.0
    %377 = vmatprep.subr.mxu0 0.0
    %378 = vmatpush1.msra.mxu0 0.0
    %379 = vmatprep.subr.mxu0 0.0
    %380 = vmatpush1.msra.mxu0 0.0
    %381 = vmatprep.subr.mxu0 0.0
    %382 = vmatpush1.msra.mxu0 0.0
    %383 = vmatprep.subr.mxu0 0.0
    %384 = vmatpush1.msra.mxu0 0.0
    %385 = vmatprep.subr.mxu0 0.0
    %386 = vmatpush1.msra.mxu0 0.0
    %387 = vmatprep.subr.mxu0 0.0
    %388 = vmatpush1.msra.mxu0 0.0
    %389 = vmatprep.subr.mxu0 0.0
    %390 = vmatpush1.msra.mxu0 0.0
    %391 = vmatprep.subr.mxu0 0.0
    %392 = vmatpush1.msra.mxu0 0.0
    %393 = vmatprep.subr.mxu0 0.0
    %394 = vmatpush1.msra.mxu0 0.0
    %395 = vmatprep.subr.mxu0 0.0
    %396 = vmatpush1.msra.mxu0 0.0
    %397 = vmatprep.subr.mxu0 0.0
    %398 = vmatpush1.msra.mxu0 0.0
    %399 = vmatprep.subr.mxu0 0.0
    %400 = vmatpush1.msra.mxu0 0.0
    %401 = vmatprep.subr.mxu0 0.0
    %402 = vmatpush1.msra.mxu0 0.0
    %403 = vmatprep.subr.mxu0 0.0
    %404 = vmatpush1.msra.mxu0 0.0
    %405 = vmatprep.subr.mxu0 0.0
    %406 = vmatpush1.msra.mxu0 0.0
    %407 = vmatprep.subr.mxu0 0.0
    %408 = vmatpush1.msra.mxu0 0.0
    %409 = vmatprep.subr.mxu0 0.0
    %410 = vmatpush1.msra.mxu0 0.0
    %411 = vmatprep.mubr.f32.mxu0 0.0
    %412 = vmatmul.mubr.f32.gmra.mrb[0].mxu0 %v345
    %v413 = vpop.f32.mrb[0].mxu0
    %v414 = vadd.f32 0.0, %v413
    %v415 = vpop.f32.mrb[0].mxu0
    %416 = vdwg.mxu0
    %v417 = vadd.f32 %v340, %v414
    %v418 = vld [vmem:[%s8] sm:$0xf]
    %420 = vset.pattern.permute.xlu0 0
    %421 = vperm.xlu0 %420, %v418
    %v422 = vpop.permute.xlu0 %421
    %v424 = vadd.f32 %v417, %v422
    %v425 = vmax.f32 %v424, 0.0
    %v427 = vrot.slane %v414, 7
    %v429 = vadd.f32 %v340, %v427
    %v430 = vmul.f32 %v267, %v267
    %v431 = vrot.slane %v430, 4
    %v432 = vadd.f32 %v430, %v431
    %v433 = vrot.slane %v432, 2
    %v434 = vadd.f32 %v432, %v433
    %v435 = vrot.slane %v434, 1
    %v436 = vadd.f32 %v434, %v435
    %v437 = vmul.f32 %v54, %v54
    %v438 = vmul.f32 %v55, %v55
    %v439 = vadd.f32 %v437, %v438
    %v440 = vrot.slane %v439, 4
    %v441 = vadd.f32 %v439, %v440
    %v442 = vrot.slane %v441, 2
    %v443 = vadd.f32 %v441, %v442
    %v444 = vrot.slane %v443, 1
    %v445 = vadd.f32 %v443, %v444
    %v446 = vadd.f32 %v436, %v445
    %v447 = vmul.f32 %v429, %v429
    %v448 = vsub.f32 %v447, %v446
    %v449 = vmul.f32 %v448, 0.5
    %s450 = sld [smem:[#allocation2]]
    %s451 = sld [smem:[#allocation2 + $0x1]]
    %v452 = vld [vmem:[%s9] sm:$0x1]
    %v454 = vrot.slane %v340, 4
    %vm456 = vcmask 31744
    %v458 = vsel %vm456, %v452, 0
    %vm460 = vcmask 1043456
    %v462 = vsel %vm460, %v425, 0
    %464 = vmatprep.subr.mxu0 0.0
    %465 = vmatpush1.msra.mxu0 %v462
    %466 = vmatprep.subr.mxu0 0.0
    %467 = vmatpush1.msra.mxu0 0.0
    %468 = vmatprep.subr.mxu0 0.0
    %469 = vmatpush1.msra.mxu0 0.0
    %470 = vmatprep.subr.mxu0 0.0
    %471 = vmatpush1.msra.mxu0 0.0
    %472 = vmatprep.subr.mxu0 0.0
    %473 = vmatpush1.msra.mxu0 0.0
    %474 = vmatprep.subr.mxu0 0.0
    %475 = vmatpush1.msra.mxu0 0.0
    %476 = vmatprep.subr.mxu0 0.0
    %477 = vmatpush1.msra.mxu0 0.0
    %478 = vmatprep.subr.mxu0 0.0
    %479 = vmatpush1.msra.mxu0 0.0
    %480 = vmatprep.subr.mxu0 0.0
    %481 = vmatpush1.msra.mxu0 0.0
    %482 = vmatprep.subr.mxu0 0.0
    %483 = vmatpush1.msra.mxu0 0.0
    %484 = vmatprep.subr.mxu0 0.0
    %485 = vmatpush1.msra.mxu0 0.0
    %486 = vmatprep.subr.mxu0 0.0
    %487 = vmatpush1.msra.mxu0 0.0
    %488 = vmatprep.subr.mxu0 0.0
    %489 = vmatpush1.msra.mxu0 0.0
    %490 = vmatprep.subr.mxu0 0.0
    %491 = vmatpush1.msra.mxu0 0.0
    %492 = vmatprep.subr.mxu0 0.0
    %493 = vmatpush1.msra.mxu0 0.0
    %494 = vmatprep.subr.mxu0 0.0
    %495 = vmatpush1.msra.mxu0 0.0
    %496 = vmatprep.subr.mxu0 0.0
    %497 = vmatpush1.msra.mxu0 0.0
    %498 = vmatprep.subr.mxu0 0.0
    %499 = vmatpush1.msra.mxu0 0.0
    %500 = vmatprep.subr.mxu0 0.0
    %501 = vmatpush1.msra.mxu0 0.0
    %502 = vmatprep.subr.mxu0 0.0
    %503 = vmatpush1.msra.mxu0 0.0
    %504 = vmatprep.subr.mxu0 0.0
    %505 = vmatpush1.msra.mxu0 0.0
    %506 = vmatprep.subr.mxu0 0.0
    %507 = vmatpush1.msra.mxu0 0.0
    %508 = vmatprep.subr.mxu0 0.0
    %509 = vmatpush1.msra.mxu0 0.0
    %510 = vmatprep.subr.mxu0 0.0
    %511 = vmatpush1.msra.mxu0 0.0
    %512 = vmatprep.subr.mxu0 0.0
    %513 = vmatpush1.msra.mxu0 0.0
    %514 = vmatprep.subr.mxu0 0.0
    %515 = vmatpush1.msra.mxu0 0.0
    %516 = vmatprep.subr.mxu0 0.0
    %517 = vmatpush1.msra.mxu0 0.0
    %518 = vmatprep.subr.mxu0 0.0
    %519 = vmatpush1.msra.mxu0 0.0
    %520 = vmatprep.subr.mxu0 0.0
    %521 = vmatpush1.msra.mxu0 0.0
    %522 = vmatprep.subr.mxu0 0.0
    %523 = vmatpush1.msra.mxu0 0.0
    %524 = vmatprep.subr.mxu0 0.0
    %525 = vmatpush1.msra.mxu0 0.0
    %526 = vmatprep.subr.mxu0 0.0
    %527 = vmatpush1.msra.mxu0 0.0
    %528 = vmatprep.mubr.f32.mxu0 0.0
    %529 = vmatmul.mubr.f32.gmra.mrb[0].mxu0 %v458
    %v530 = vpop.f32.mrb[0].mxu0
    %v531 = vadd.f32 %v454, %v530
    %v532 = vpop.f32.mrb[0].mxu0
    %533 = vdwg.mxu0
    %v534 = vstv %s450
    %v535 = vmul.f32 %v449, %v534
    %v537 = vrot.slane %v535, 5
    %v539 = vadd.f32 %v531, %v537
    %v540 = vstv %s451
    %v541 = vadd.f32 %v539, %v540
    %v542 = vxor.u32 %v541, 2147483648
    %v543 = vmul.f32 %v542, 1.442695
    %v544 = vpow.pop %v543
    %v545 = vadd.f32 %v544, 1.0
    %v546 = vrcp.pop %v545
    %v547 = vmul.f32 1.0, %v546
    %548 = vst [vmem:[#allocation5] sm:$0x1] %v547
    // Predicated region
    $region50: #{tpu_custom_call.1} parent=1 // pred_check
      _
    $region51: #{tpu_custom_call.1} parent=1 // pred_check_branch
      %550 = sbr.rel (0) target = $region53
    $region52: #{tpu_custom_call.1} parent=1 // pred_region
      %s552 = ssub.s32 16, 16
      %553 = vsyncadd [#allocation3], %s552
      %s555 = sshll.u32 [#allocation5], 4
      %s556 = int_to_ptr.vmem [resolvable:$true] %s555
      %558 = dma.vmem_to_hbm [thread:$0]  %s556, 16, %s11, [#allocation3]
    $region53: #{tpu_custom_call.1} parent=1 // pred_fallthru
      _
    // Predicated region
    $region54: #{tpu_custom_call.1} parent=1 // pred_check
      _
    $region55: #{tpu_custom_call.1} parent=1 // pred_check_branch
      %560 = sbr.rel (0) target = $region57
    $region56: #{tpu_custom_call.1} parent=1 // pred_region
      %561 = dma.done [#allocation3], 16
    $region57: #{tpu_custom_call.1} parent=1 // pred_fallthru
      _
    %562 = vsyncpa [#allocation3], 1
    %563 = vsyncpa [#allocation4], 1

</llo_original>
